<compile_context>
chip_gen: v7x
topology: tpu7x:2x2x1
jax: 0.10.0
libtpu: 0.0.40
codegen_flags: <defaults>
</compile_context>

<pallas_src>
import math

import jax
import jax.numpy as jnp
from jax.experimental import pallas as pl
from jax.experimental.pallas import tpu as pltpu


def _round_up(v, m):
    return (v + m - 1) // m * m


def _sublane(dtype):
    # rows per packed sublane tile: 8 for 4-byte, 16 for 2-byte, 32 for 1-byte dtypes
    return max(8, 32 // jnp.dtype(dtype).itemsize)


def _vmem_physical_bytes():
    try:
        cap = getattr(pltpu.get_tpu_info(), "vmem_capacity_bytes", None)
        if cap:
            return int(cap)
    except Exception:
        pass
    return 64 * 1024 * 1024          # conservative (v7x-sized) fallback


def _footprint_bytes(tm, tk, out_pad, n_store, x_it, w_it, streamed):
    """Conservative VMEM footprint estimate for one pipelined row tile."""
    w_cost = 2 * tk * out_pad * w_it           # weight block (assume double-buffered)
    x_cost = 2 * tm * tk * x_it                # activation tile (double-buffered)
    o_cost = 2 * tm * n_store * x_it           # output tile (double-buffered)
    b_cost = 2 * out_pad * w_it                # bias row
    a_cost = tm * out_pad * 4 if streamed else 0   # f32 accumulator scratch
    f_cost = 4 * tm * n_store * 4              # finalize temporaries headroom
    return w_cost + x_cost + o_cost + b_cost + a_cost + f_cost


# ----------------------------- kernel bodies ---------------------------------


def _finalize_store(xs, c, out_ref):
    """xs: (tm, out_pad) f32, x_space in cols [0, OUT), zeros beyond.

    Writes the lane-dense [x_time | x_space | 0-pad] block into out_ref
    (tm, n_store) with one unmasked full-block store."""
    # ||x_space||^2: one cross-lane reduce per row tile; zero pad cols add nothing.
    sq = jnp.sum(xs * xs, axis=-1, keepdims=True) + c
    x_time = jnp.sqrt(jnp.maximum(sq, 1e-8))
    pad = out_ref.shape[-1] - xs.shape[-1]
    if pad:                                     # OUT % 128 == 0 case
        xs = jnp.concatenate(
            [xs, jnp.zeros((xs.shape[0], pad), xs.dtype)], axis=-1)
    shifted = pltpu.roll(xs, shift=1, axis=1)   # XLU lane rotate, once per row tile
    lane = jax.lax.broadcasted_iota(jnp.int32, shifted.shape, 1)
    fused = jnp.where(lane == 0, x_time, shifted)   # drop x_time into column 0
    out_ref[...] = fused.astype(out_ref.dtype)


def _lorentz_linear_resident_kernel(c_ref, x_ref, w_ref, b_ref, out_ref):
    # c_ref: (1,) SMEM | x_ref: (tm, IN) | w_ref: (IN, out_pad) VMEM-resident
    # b_ref: (1, out_pad) | out_ref: (tm, n_store)
    xs = jnp.dot(x_ref[...], w_ref[...], preferred_element_type=jnp.float32)
    xs = xs + b_ref[...].astype(jnp.float32)
    _finalize_store(xs, c_ref[0], out_ref)


def _lorentz_linear_streamed_kernel(c_ref, x_ref, w_ref, b_ref, out_ref, acc_ref):
    # c_ref: (1,) SMEM | x_ref: (tm, tk) | w_ref: (tk, out_pad)
    # b_ref: (1, out_pad) | out_ref: (tm, n_store) | acc_ref: (tm, out_pad) f32
    k = pl.program_id(1)
    nk = pl.num_programs(1)
    part = jnp.dot(x_ref[...], w_ref[...], preferred_element_type=jnp.float32)

    @pl.when(k == 0)
    def _first():
        acc_ref[...] = part          # write, don't RMW (saves v5e's single vst slot)

    @pl.when(k > 0)
    def _accumulate():
        acc_ref[...] += part

    @pl.when(k == nk - 1)
    def _finalize():
        xs = acc_ref[...] + b_ref[...].astype(jnp.float32)
        _finalize_store(xs, c_ref[0], out_ref)


# ----------------------------- host-side wrappers -----------------------------


def prepare_lorentz_linear(weight, bias, c, *, x_dtype=None,
                           force_streamed=False, tk_target=512,
                           vmem_physical=None):
    """One-time parameter prep (transpose + lane padding), hoisted out of the
    per-call path.  weight: (OUT, IN); bias: (OUT,) or None; c: scalar curvature."""
    OUT, IN = weight.shape
    w_dtype = jnp.dtype(weight.dtype)
    x_dtype = jnp.dtype(x_dtype) if x_dtype is not None else w_dtype
    x_it, w_it = x_dtype.itemsize, w_dtype.itemsize

    physical = int(vmem_physical or _vmem_physical_bytes())
    budget = physical * 3 // 4                 # leave Mosaic-internal headroom

    out_pad = _round_up(OUT, 128)              # MXU lane width (no augmented column)
    n_store = _round_up(OUT + 1, 128)          # lane-dense [time|space|pad] store width

    # --- weight residency decision (single biggest bandwidth lever) -----------
    tm_cap = 1024 if physical >= (100 << 20) else 512
    resident = False
    if not force_streamed:
        for tm_try in (tm_cap, 512, 256, 128, 64):
            if tm_try > tm_cap:
                continue
            if _footprint_bytes(tm_try, IN, out_pad, n_store,
                                x_it, w_it, streamed=False) <= budget:
                resident, tm_cap = True, tm_try
                break

    if resident:
        tk = IN                                # whole K in one step; no K padding
        in_pad = IN
    else:
        tk = min(int(tk_target), 512)
        tk = max(128, (tk // 128) * 128)
        while tk > 128 and 2 * tk * out_pad * w_it > budget // 3:
            tk //= 2
        in_pad = _round_up(IN, tk)             # pad K up to tk (no divisor collapse)
        # TODO(synk): also tile the OUT axis (partial-norm scratch) for extremely
        # wide layers where even a (128, out_pad) weight block busts v7x VMEM.

    w_prep = jnp.zeros((in_pad, out_pad), w_dtype).at[:IN, :OUT].set(weight.T)
    if bias is None:
        b_prep = jnp.zeros((1, out_pad), w_dtype)
    else:
        b_prep = jnp.zeros((1, out_pad), bias.dtype).at[0, :OUT].set(bias)
    c_arr = jnp.asarray(c, jnp.float32).reshape((1,))
    # TODO(synk): optional bf16 cast of w_prep / x for 2x MXU rate and half the
    # weight bytes when the model tolerates it (keep the f32 accumulator/finalize).

    return dict(w=w_prep, b=b_prep, c=c_arr, in_features=IN, out_features=OUT,
                in_pad=in_pad, out_pad=out_pad, n_store=n_store, tk=tk,
                resident=resident, tm_cap=tm_cap, budget=budget)


def lorentz_linear_apply(params, x):
    """x: (..., in_features) -> (..., out_features + 1) on the Lorentz manifold."""
    IN, OUT = params["in_features"], params["out_features"]
    in_pad, out_pad, n_store = params["in_pad"], params["out_pad"], params["n_store"]
    tk, resident = params["tk"], params["resident"]
    budget, tm_cap = params["budget"], params["tm_cap"]
    w_prep, b_prep, c_arr = params["w"], params["b"], params["c"]

    assert x.shape[-1] == IN
    lead = x.shape[:-1]
    M = int(math.prod(lead))
    x2d = x.reshape(M, IN)

    x_it = jnp.dtype(x.dtype).itemsize
    w_it = jnp.dtype(w_prep.dtype).itemsize
    sub = _sublane(x.dtype)
    streamed = not resident

    # --- row tiling: target tm_cap; two tiles for small M (v7x dual-TC) -------
    tm = tm_cap
    if M <= tm:
        tm = _round_up(-(-M // 2), sub) if M > sub else _round_up(M, sub)
    while tm > sub and _footprint_bytes(tm, tk, out_pad, n_store,
                                        x_it, w_it, streamed) > budget:
        tm = max(sub, _round_up(tm // 2, sub))
    m_pad = _round_up(M, tm)

    if m_pad != M or in_pad != IN:
        x2d = jnp.pad(x2d, ((0, m_pad - M), (0, in_pad - IN)))

    est = _footprint_bytes(tm, tk, out_pad, n_store, x_it, w_it, streamed)
    vmem_limit = int(min(budget, max(32 << 20, est * 5 // 4 + (4 << 20))))

    if resident:
        grid = (m_pad // tm,)
        in_specs = [
            pl.BlockSpec(memory_space=pltpu.MemorySpace.SMEM),      # curvature c
            pl.BlockSpec((tm, in_pad), lambda i: (i, 0)),           # x row tile
            pl.BlockSpec((in_pad, out_pad), lambda i: (0, 0)),      # resident W^T
            pl.BlockSpec((1, out_pad), lambda i: (0, 0)),           # bias
        ]
        out_specs = pl.BlockSpec((tm, n_store), lambda i: (i, 0))
        scratch = []
        kernel = _lorentz_linear_resident_kernel
        dims = ("parallel",)
    else:
        grid = (m_pad // tm, in_pad // tk)
        in_specs = [
            pl.BlockSpec(memory_space=pltpu.MemorySpace.SMEM),      # curvature c
            pl.BlockSpec((tm, tk), lambda i, k: (i, k)),            # x tile
            pl.BlockSpec((tk, out_pad), lambda i, k: (k, 0)),       # W^T K-block
            pl.BlockSpec((1, out_pad), lambda i, k: (0, 0)),        # bias
        ]
        out_specs = pl.BlockSpec((tm, n_store), lambda i, k: (i, 0))
        scratch = [pltpu.VMEM((tm, out_pad), jnp.float32)]
        kernel = _lorentz_linear_streamed_kernel
        dims = ("parallel", "arbitrary")

    out2d = pl.pallas_call(
        kernel,
        out_shape=jax.ShapeDtypeStruct((m_pad, n_store), x.dtype),
        grid_spec=pltpu.PrefetchScalarGridSpec(
            num_scalar_prefetch=0,
            grid=grid,
            in_specs=in_specs,
            out_specs=out_specs,
            scratch_shapes=scratch,
        ),
        compiler_params=pltpu.CompilerParams(
            dimension_semantics=dims,
            vmem_limit_bytes=vmem_limit,
        ),
    )(c_arr, x2d, w_prep, b_prep)

    if m_pad != M or n_store != OUT + 1:
        out2d = out2d[:M, :OUT + 1]
    return out2d.reshape(*lead, OUT + 1)
    # TODO(synk): x_manifold='euc' (expmap0 lift), return_space=True, num_heads>1
    # reshape and manifold_out rescale are thin plain-JAX glue around this kernel.


# ----------------------------- self-test ---------------------------------------


def _xavier_params(key, in_features, out_features, *, random_bias=False):
    # Matches reset_parameters(): xavier_uniform_(weight, gain=sqrt(2)); bias = 0.
    gain = math.sqrt(2.0)
    bound = gain * math.sqrt(6.0 / (in_features + out_features))
    kw, kb = jax.random.split(key)
    w = jax.random.uniform(kw, (out_features, in_features), jnp.float32,
                           minval=-bound, maxval=bound)
    if random_bias:        # exercise the bias path (module's default init is zero)
        b = jax.random.normal(kb, (out_features,), jnp.float32) * 0.1
    else:
        b = jnp.zeros((out_features,), jnp.float32)
    return w, b


def _reference(x, weight, bias, c):
    xs = jnp.matmul(x, weight.T, precision=jax.lax.Precision.HIGHEST) + bias
    xt = jnp.sqrt(jnp.maximum(jnp.sum(xs * xs, -1, keepdims=True) + c, 1e-8))
    return jnp.concatenate([xt, xs], axis=-1)


if __name__ == "__main__":
    root = jax.random.PRNGKey(0)

    cases = [
        # (B, S, IN, OUT, curvature, random_bias, prep_kwargs)
        (2, 8, 32, 32, 1.0, False, {}),                      # small, weight-resident
        (2, 8, 32, 128, 0.5, True, {}),                      # OUT % 128 == 0 (roll+pad)
        (2, 8, 256, 64, 2.0, True,
         dict(force_streamed=True, tk_target=128)),          # K-streamed fallback
    ]

    for idx, (B, S, IN, OUT, c, rnd_b, prep_kw) in enumerate(cases):
        kx, kp = jax.random.split(jax.random.fold_in(root, idx))
        x = jax.random.normal(kx, (B, S, IN), jnp.float32)
        weight, bias = _xavier_params(kp, IN, OUT, random_bias=rnd_b)

        params = prepare_lorentz_linear(weight, bias, c, **prep_kw)  # one-time prep
        out = lorentz_linear_apply(params, x)
        out = jax.block_until_ready(out)

        ref = _reference(x, weight, bias, c)
        assert out.shape == (B, S, OUT + 1), (out.shape, (B, S, OUT + 1))
        err = float(jnp.max(jnp.abs(out - ref)))
        assert jnp.allclose(out, ref, rtol=2e-2, atol=2e-2), (
            f"case {idx}: max abs err {err}")

    print("KERNEL_OK")
</pallas_src>

<mosaic_0001>
module attributes {stable_mosaic.version = 11 : i64} {
  func.func @_lorentz_linear_resident_kernel(%arg0: i32, %arg1: memref<1xf32, #tpu.memory_space<smem>>, %arg2: memref<8x32xf32, #tpu.memory_space<vmem>>, %arg3: memref<32x128xf32, #tpu.memory_space<vmem>>, %arg4: memref<1x128xf32, #tpu.memory_space<vmem>>, %arg5: memref<8x128xf32, #tpu.memory_space<vmem>>) attributes {dimension_semantics = [#tpu.dimension_semantics<parallel>], iteration_bounds = array<i64: 2>, scalar_prefetch = 0 : i64, scratch_operands = 0 : i64, tpu.core_type = #tpu.core_type<tc>, window_params = [{transform_indices = @transform_0, window_bounds = array<i64: 1>}, {transform_indices = @transform_1, window_bounds = array<i64: 8, 32>}, {pipeline_mode = #tpu.pipeline_mode<synchronous>, transform_indices = @transform_2, window_bounds = array<i64: 32, 128>}, {pipeline_mode = #tpu.pipeline_mode<synchronous>, transform_indices = @transform_3, window_bounds = array<i64: 1, 128>}, {transform_indices = @transform_4, window_bounds = array<i64: 8, 128>}]} {
    %c0 = arith.constant 0 : index
    %c0_0 = arith.constant 0 : index
    %0 = vector.load %arg2[%c0, %c0_0] : memref<8x32xf32, #tpu.memory_space<vmem>>, vector<8x32xf32>
    %c0_1 = arith.constant 0 : index
    %c0_2 = arith.constant 0 : index
    %1 = vector.load %arg3[%c0_1, %c0_2] : memref<32x128xf32, #tpu.memory_space<vmem>>, vector<32x128xf32>
    %cst = arith.constant dense<0.000000e+00> : vector<8x128xf32>
    %2 = tpu.matmul %0, %1, %cst {dimension_numbers = #tpu.dot_dimension_numbers<[1], [0], [0], [1], [0, 0, 1, 1], [], []>} : vector<8x32xf32>, vector<32x128xf32>, vector<8x128xf32> -> vector<8x128xf32>
    %c0_3 = arith.constant 0 : index
    %c0_4 = arith.constant 0 : index
    %3 = vector.load %arg4[%c0_3, %c0_4] : memref<1x128xf32, #tpu.memory_space<vmem>>, vector<1x128xf32>
    %4 = vector.broadcast %3 : vector<1x128xf32> to vector<8x128xf32>
    %5 = arith.addf %2, %4 : vector<8x128xf32>
    %c0_5 = arith.constant 0 : index
    %6 = memref.load %arg1[%c0_5] : memref<1xf32, #tpu.memory_space<smem>>
    %7 = arith.mulf %5, %5 : vector<8x128xf32>
    %cst_6 = arith.constant dense<0.000000e+00> : vector<8xf32>
    %8 = vector.multi_reduction <add>, %7, %cst_6 [1] : vector<8x128xf32> to vector<8xf32>
    %9 = vector.shape_cast %8 : vector<8xf32> to vector<8x1xf32>
    %10 = vector.broadcast %6 : f32 to vector<8x1xf32>
    %11 = arith.addf %9, %10 : vector<8x1xf32>
    %cst_7 = arith.constant 9.99999993E-9 : f32
    %12 = vector.broadcast %cst_7 : f32 to vector<8x1xf32>
    %13 = arith.maximumf %11, %12 : vector<8x1xf32>
    %14 = math.sqrt %13 : vector<8x1xf32>
    %c1_i32 = arith.constant 1 : i32
    %15 = tpu.dynamic_rotate %5 by %c1_i32 dim 1 : vector<8x128xf32>, i32 -> vector<8x128xf32>
    %16 = tpu.iota {dimensions = array<i32: 1>} : vector<8x128xi32>
    %c0_i32 = arith.constant 0 : i32
    %17 = vector.broadcast %c0_i32 : i32 to vector<8x128xi32>
    %18 = arith.cmpi eq, %16, %17 : vector<8x128xi32>
    %19 = vector.shape_cast %14 : vector<8x1xf32> to vector<8x1xf32>
    %20 = vector.broadcast %19 : vector<8x1xf32> to vector<8x128xf32>
    %21 = arith.select %18, %20, %15 : vector<8x128xi1>, vector<8x128xf32>
    %c0_8 = arith.constant 0 : index
    %c0_9 = arith.constant 0 : index
    %22 = vector.load %arg5[%c0_8, %c0_9] : memref<8x128xf32, #tpu.memory_space<vmem>>, vector<8x128xf32>
    tpu.vector_store %arg5[%c0_8, %c0_9], %21 {strides = array<i32>} : memref<8x128xf32, #tpu.memory_space<vmem>>, vector<8x128xf32>,
    return
  }
  func.func @transform_0(%arg0: i32) -> i32 {
    %c0_i32 = arith.constant 0 : i32
    %c0_i32_0 = arith.constant 0 : i32
    return %c0_i32 : i32
  }
  func.func @transform_1(%arg0: i32) -> (i32, i32) {
    %c0_i32 = arith.constant 0 : i32
    %c0_i32_0 = arith.constant 0 : i32
    return %arg0, %c0_i32 : i32, i32
  }
  func.func @transform_2(%arg0: i32) -> (i32, i32) {
    %c0_i32 = arith.constant 0 : i32
    %c0_i32_0 = arith.constant 0 : i32
    %c0_i32_1 = arith.constant 0 : i32
    return %c0_i32, %c0_i32_0 : i32, i32
  }
  func.func @transform_3(%arg0: i32) -> (i32, i32) {
    %c0_i32 = arith.constant 0 : i32
    %c0_i32_0 = arith.constant 0 : i32
    %c0_i32_1 = arith.constant 0 : i32
    return %c0_i32, %c0_i32_0 : i32, i32
  }
  func.func @transform_4(%arg0: i32) -> (i32, i32) {
    %c0_i32 = arith.constant 0 : i32
    %c0_i32_0 = arith.constant 0 : i32
    return %arg0, %c0_i32 : i32, i32
  }
}

</mosaic_0001>

<llo_original>
// kernel: tpu_custom_call.1
$region0: #{tpu_custom_call.1}
  #allocation0 [shape = 'u32[]', space=smem, size = 0x4, offset = 0x4, fixed_abs, tag = 'smem constant byte address 0x4 - core index']
  #allocation1 [shape = 'u32[144,128]{1,0:T(1,128)}', space=vmem, size = 0x12000, scoped, tag = 'internal scratch']
  #allocation2 [shape = 'f32[1]{0:T(128)S(6)}', space=smem, size = 0x200, scoped, tag = 'scoped memory for tpu_custom_call.1']
  %s0 = inlined_call_operand.<no memory space> [shape: f32[1], index: 0, kind: input, shape index: {}]
  %s1 = inlined_call_operand.hbm [shape: f32[16,32], index: 1, kind: input, shape index: {}]
  %s2 = inlined_call_operand.hbm [shape: f32[32,128], index: 2, kind: input, shape index: {}]
  %s3 = inlined_call_operand.vmem [shape: f32[1,128], index: 3, kind: input, shape index: {}]
  %s4 = inlined_call_operand.hbm [shape: f32[16,128], index: 4, kind: output, shape index: {}]
  %s5 = sld [smem:[#allocation0]]
  $region57: #{tpu_custom_call.1} parent=0
    _
  %s7 = ssub.s32 1, %s5
  %s8 = scalar_select 0, %s7, %s5
  %9 = sst [smem:[#allocation2]] %s0
  $region1: #{tpu_custom_call.1} parent=0
    #allocation3 [shape = 'u8[8192]{0}', space=vmem, size = 0x2000, scoped, tag = 'input window, operand 1']
    #allocation4 [shape = 's32[2]{0}', space=sflag, size = 0x8, scoped, tag = 'scoped memory for tpu_custom_call.1']
    #allocation5 [shape = 's32[2]{0}', space=sflag, size = 0x8, scoped, tag = 'scoped memory for tpu_custom_call.1']
    #allocation6 [shape = 'u8[16384]{0}', space=vmem, size = 0x4000, scoped, tag = 'input window, operand 2, single buffered']
    #allocation7 [shape = 's32[1]{0}', space=sflag, size = 0x4, scoped, tag = 'scoped memory for tpu_custom_call.1']
    #allocation8 [shape = 'u8[8192]{0}', space=vmem, size = 0x2000, scoped, tag = 'output window, operand 0']
    %10 = vsyncpa [#allocation4], 0
    %s11 = scalar_lea.sflag [#allocation4], 1
    %12 = vsyncpa %s11, 0
    %13 = vsyncpa [#allocation7], 0
    %14 = vsyncpa [#allocation5], 0
    %s15 = scalar_lea.sflag [#allocation5], 1
    %16 = vsyncpa %s15, 0
    loop: start=0, step=1, limit=4
    $region2: #{tpu_custom_call.1} parent=1 // loop_pre_header
      _
    $region3: #{tpu_custom_call.1} parent=1 // loop_header
      %s18 = sphi 0, %s22
      %p19 = scmp.ge.s32.totalorder %s18, 4
      %s26 = sphi 0, %s26
      %s28 = sphi 0, %s26
      %s29 = sphi 0, %s28
      %s43 = sphi 0, %s29
      %s49 = sphi 0, %s51
      %s52 = sphi 0, %s49
      %s53 = sphi 0, %s52
      %s69 = sphi 0, %s53
      %s73 = sphi 0, %s73
      %s75 = sphi 0, %s73
      %s76 = sphi 0, %s75
      %s90 = sphi 0, %s76
      %s94 = sphi 0, %s94
      %s96 = sphi 0, %s94
      %s97 = sphi 0, %s96
      %s111 = sphi 0, %s97
      %s117 = sphi 0, %s119
      %s120 = sphi 0, %s117
      %s121 = sphi 0, %s120
      %s137 = sphi 0, %s121
    $region4: #{tpu_custom_call.1} parent=1 // loop_header_branch
      %21 = sbr.rel (%p19) target = $region8
    $region5: #{tpu_custom_call.1} parent=1 // loop_body
      %s23 = ssub.s32 %s18, 1
      %s24 = ssub.s32 %s18, 2
      %s25 = sadd.s32 %s18, 1
      %s27 = sadd.s32 %s26, 1
      %p30 = scmp.eq.s32.totalorder %s18, 1
      %p31 = scmp.ne.s32.totalorder %s26, %s28
      %p32 = scmp.eq.s32.totalorder %s18, 0
      %p33 = por %p31, %p32
      %p34 = scmp.ne.s32.totalorder %s26, %s28
      %p35 = scmp.eq.s32.totalorder %s23, 1
      %p36 = por %p34, %p35
      %p37 = scmp.ne.s32.totalorder %s28, %s29
      %p38 = scmp.eq.s32.totalorder %s23, 0
      %p39 = por %p37, %p38
      %p40 = scmp.ne.s32.totalorder %s28, %s29
      %p41 = scmp.eq.s32.totalorder %s24, 1
      %p42 = por %p40, %p41
      %p44 = scmp.ne.s32.totalorder %s29, %s43
      %p45 = scmp.eq.s32.totalorder %s24, 0
      %p46 = por %p44, %p45
      %s47 = ssub.s32 %s18, %s25
      %p48 = scmp.eq.s32.totalorder %s47, 0
      %s50 = sadd.s32 %s49, 1
      %s51 = scalar_select %p48, %s49, %s50
      %p54 = pneg %p48
      %p55 = scmp.eq.s32.totalorder %s18, 1
      %p56 = por %p54, %p55
      %p57 = scmp.ne.s32.totalorder %s49, %s52
      %p58 = scmp.eq.s32.totalorder %s18, 0
      %p59 = por %p57, %p58
      %p60 = scmp.ne.s32.totalorder %s49, %s52
      %p61 = scmp.eq.s32.totalorder %s23, 1
      %p62 = por %p60, %p61
      %p63 = scmp.ne.s32.totalorder %s52, %s53
      %p64 = scmp.eq.s32.totalorder %s23, 0
      %p65 = por %p63, %p64
      %p66 = scmp.ne.s32.totalorder %s52, %s53
      %p67 = scmp.eq.s32.totalorder %s24, 1
      %p68 = por %p66, %p67
      %p70 = scmp.ne.s32.totalorder %s53, %s69
      %p71 = scmp.eq.s32.totalorder %s24, 0
      %p72 = por %p70, %p71
      %s74 = sadd.s32 %s73, 1
      %p77 = scmp.eq.s32.totalorder %s18, 1
      %p78 = scmp.ne.s32.totalorder %s73, %s75
      %p79 = scmp.eq.s32.totalorder %s18, 0
      %p80 = por %p78, %p79
      %p81 = scmp.ne.s32.totalorder %s73, %s75
      %p82 = scmp.eq.s32.totalorder %s23, 1
      %p83 = por %p81, %p82
      %p84 = scmp.ne.s32.totalorder %s75, %s76
      %p85 = scmp.eq.s32.totalorder %s23, 0
      %p86 = por %p84, %p85
      %p87 = scmp.ne.s32.totalorder %s75, %s76
      %p88 = scmp.eq.s32.totalorder %s24, 1
      %p89 = por %p87, %p88
      %p91 = scmp.ne.s32.totalorder %s76, %s90
      %p92 = scmp.eq.s32.totalorder %s24, 0
      %p93 = por %p91, %p92
      %s95 = sadd.s32 %s94, 1
      %p98 = scmp.eq.s32.totalorder %s18, 1
      %p99 = scmp.ne.s32.totalorder %s94, %s96
      %p100 = scmp.eq.s32.totalorder %s18, 0
      %p101 = por %p99, %p100
      %p102 = scmp.ne.s32.totalorder %s94, %s96
      %p103 = scmp.eq.s32.totalorder %s23, 1
      %p104 = por %p102, %p103
      %p105 = scmp.ne.s32.totalorder %s96, %s97
      %p106 = scmp.eq.s32.totalorder %s23, 0
      %p107 = por %p105, %p106
      %p108 = scmp.ne.s32.totalorder %s96, %s97
      %p109 = scmp.eq.s32.totalorder %s24, 1
      %p110 = por %p108, %p109
      %p112 = scmp.ne.s32.totalorder %s97, %s111
      %p113 = scmp.eq.s32.totalorder %s24, 0
      %p114 = por %p112, %p113
      %s115 = ssub.s32 %s18, %s25
      %p116 = scmp.eq.s32.totalorder %s115, 0
      %s118 = sadd.s32 %s117, 1
      %s119 = scalar_select %p116, %s117, %s118
      %p122 = pneg %p116
      %p123 = scmp.eq.s32.totalorder %s18, 1
      %p124 = por %p122, %p123
      %p125 = scmp.ne.s32.totalorder %s117, %s120
      %p126 = scmp.eq.s32.totalorder %s18, 0
      %p127 = por %p125, %p126
      %p128 = scmp.ne.s32.totalorder %s117, %s120
      %p129 = scmp.eq.s32.totalorder %s23, 1
      %p130 = por %p128, %p129
      %p131 = scmp.ne.s32.totalorder %s120, %s121
      %p132 = scmp.eq.s32.totalorder %s23, 0
      %p133 = por %p131, %p132
      %p134 = scmp.ne.s32.totalorder %s120, %s121
      %p135 = scmp.eq.s32.totalorder %s24, 1
      %p136 = por %p134, %p135
      %p138 = scmp.ne.s32.totalorder %s121, %s137
      %p139 = scmp.eq.s32.totalorder %s24, 0
      %p140 = por %p138, %p139
      %p141 = scmp.le.s32.totalorder 1, %s18
      %p142 = scmp.lt.s32.totalorder %s18, 3
      %p143 = pnand %p141, %p142
      %p144 = pneg %p143
      // Predicated region
      $region9: #{tpu_custom_call.1} parent=5 // pred_check
        _
      $region10: #{tpu_custom_call.1} parent=5 // pred_check_branch
        %146 = sbr.rel (%p143) target = $region12
      $region11: #{tpu_custom_call.1} parent=5 // pred_region
        %s147 = ssub.s32 %s18, 1
        // Predicated region
        $region13: #{tpu_custom_call.1} parent=11 // pred_check
          %p148 = pneg %p39
        $region14: #{tpu_custom_call.1} parent=11 // pred_check_branch
          %150 = sbr.rel (%p148) target = $region16
        $region15: #{tpu_custom_call.1} parent=11 // pred_region
          _
        $region16: #{tpu_custom_call.1} parent=11 // pred_fallthru
          _
        // Predicated region
        $region17: #{tpu_custom_call.1} parent=11 // pred_check
          %p151 = pneg %p86
        $region18: #{tpu_custom_call.1} parent=11 // pred_check_branch
          %153 = sbr.rel (%p151) target = $region20
        $region19: #{tpu_custom_call.1} parent=11 // pred_region
          %s155 = ssub.s32 512, 512
          %156 = vsyncadd [#allocation7], %s155
          %s157 = sshll.u32 [#allocation6], 4
          %s158 = int_to_ptr.vmem [resolvable:$true] %s157
          %163 = dma.hbm_to_vmem [thread:$0]  %s2, 512, %s158, [#allocation7], 128, 128, 8
        $region20: #{tpu_custom_call.1} parent=11 // pred_fallthru
          _
        // Predicated region
        $region21: #{tpu_custom_call.1} parent=11 // pred_check
          %p164 = pneg %p107
        $region22: #{tpu_custom_call.1} parent=11 // pred_check_branch
          %166 = sbr.rel (%p164) target = $region24
        $region23: #{tpu_custom_call.1} parent=11 // pred_region
          _
        $region24: #{tpu_custom_call.1} parent=11 // pred_fallthru
          _
      $region12: #{tpu_custom_call.1} parent=5 // pred_fallthru
        _
      %p167 = scmp.lt.s32.totalorder %s18, 2
      // Predicated region
      $region25: #{tpu_custom_call.1} parent=5 // pred_check
        %p168 = pneg %p167
      $region26: #{tpu_custom_call.1} parent=5 // pred_check_branch
        %170 = sbr.rel (%p168) target = $region28
      $region27: #{tpu_custom_call.1} parent=5 // pred_region
        // Predicated region
        $region29: #{tpu_custom_call.1} parent=27 // pred_check
          %p171 = pneg %p59
        $region30: #{tpu_custom_call.1} parent=27 // pred_check_branch
          %173 = sbr.rel (%p171) target = $region32
        $region31: #{tpu_custom_call.1} parent=27 // pred_region
          %s174 = sand.u32 %s49, 1
          %s175 = scalar_lea.sflag [#allocation4], %s174
          %s176 = sand.u32 %s49, 1
          %s177 = smul.addr %s176, 8
          %s178 = scalar_lea.vmem [#allocation3], %s177
          %s180 = ssub.s32 128, 128
          %181 = vsyncadd %s175, %s180
          %s182 = smul.addr %s18, 128
          %s183 = scalar_lea.hbm %s1, %s182
          %s185 = sshll.u32 %s178, 4
          %s186 = int_to_ptr.vmem [resolvable:$true] %s185
          %188 = dma.hbm_to_vmem [thread:$0]  %s183, 128, %s186, %s175
        $region32: #{tpu_custom_call.1} parent=27 // pred_fallthru
          _
      $region28: #{tpu_custom_call.1} parent=5 // pred_fallthru
        _
      %p189 = scmp.le.s32.totalorder 1, %s18
      %p190 = scmp.lt.s32.totalorder %s18, 3
      %p191 = pnand %p189, %p190
      %p192 = pneg %p191
      // Predicated region
      $region33: #{tpu_custom_call.1} parent=5 // pred_check
        _
      $region34: #{tpu_custom_call.1} parent=5 // pred_check_branch
        %194 = sbr.rel (%p191) target = $region36
      $region35: #{tpu_custom_call.1} parent=5 // pred_region
        %s195 = ssub.s32 %s18, 1
        %s196 = sand.u32 %s52, 1
        %s197 = scalar_lea.sflag [#allocation4], %s196
        %s198 = sand.u32 %s52, 1
        %s199 = smul.addr %s198, 8
        %s200 = scalar_lea.vmem [#allocation3], %s199
        // Predicated region
        $region37: #{tpu_custom_call.1} parent=35 // pred_check
          %p201 = pneg %p65
        $region38: #{tpu_custom_call.1} parent=35 // pred_check_branch
          %203 = sbr.rel (%p201) target = $region40
        $region39: #{tpu_custom_call.1} parent=35 // pred_region
          %204 = dma.done %s197, 128
        $region40: #{tpu_custom_call.1} parent=35 // pred_fallthru
          _
        // Predicated region
        $region41: #{tpu_custom_call.1} parent=35 // pred_check
          %p205 = pneg %p86
        $region42: #{tpu_custom_call.1} parent=35 // pred_check_branch
          %207 = sbr.rel (%p205) target = $region44
        $region43: #{tpu_custom_call.1} parent=35 // pred_region
          %208 = dma.done [#allocation7], 512
        $region44: #{tpu_custom_call.1} parent=35 // pred_fallthru
          _
        %p209 = pneg %p39
        %p210 = pneg %p36
        %s211 = sand.u32 %s52, 1
        %s212 = scalar_lea.sflag [#allocation4], %s211
        %s213 = sand.u32 %s52, 1
        %s214 = smul.addr %s213, 8
        %s215 = scalar_lea.vmem [#allocation3], %s214
        %p216 = pneg %p65
        %p217 = pneg %p62
        %p218 = pneg %p86
        %p219 = pneg %p83
        %p220 = pneg %p107
        %p221 = pneg %p104
        %p222 = pneg %p133
        %p223 = pneg %p130
        %s224 = sand.u32 %s120, 1
        %s225 = scalar_lea.sflag [#allocation5], %s224
        %s226 = sand.u32 %s120, 1
        %s227 = smul.addr %s226, 8
        %s228 = scalar_lea.vmem [#allocation8], %s227
        %v229 = vld [vmem:[%s200] sm:$0xff]
        %v230 = vld [vmem:[#allocation6] sm:$0xff]
        %v231 = vld [vmem:[#allocation6 + $0x8] sm:$0xff]
        %v232 = vld [vmem:[#allocation6 + $0x10] sm:$0xff]
        %v233 = vld [vmem:[#allocation6 + $0x18] sm:$0xff]
        %v234 = vld [vmem:[%s3] sm:$0x1]
        %v236 = vlaneseq
        %v237 = vshrl.u32 %v236, 7
        %v238 = vsub.s32 0, %v237
        %v239 = vrot.slane %v234, %v238
        %vm241 = vcmask 261120
        %v243 = vsel %vm241, %v229, 0
        %245 = vmatprep.subr.mxu0 0.0
        %246 = vmatpush1.msra.mxu0 %v230
        %247 = vmatprep.subr.mxu0 0.0
        %248 = vmatpush1.msra.mxu0 %v231
        %249 = vmatprep.subr.mxu0 0.0
        %250 = vmatpush1.msra.mxu0 %v232
        %251 = vmatprep.subr.mxu0 0.0
        %252 = vmatpush1.msra.mxu0 %v233
        %253 = vmatprep.subr.mxu0 0.0
        %254 = vmatpush1.msra.mxu0 0.0
        %255 = vmatprep.subr.mxu0 0.0
        %256 = vmatpush1.msra.mxu0 0.0
        %257 = vmatprep.subr.mxu0 0.0
        %258 = vmatpush1.msra.mxu0 0.0
        %259 = vmatprep.subr.mxu0 0.0
        %260 = vmatpush1.msra.mxu0 0.0
        %261 = vmatprep.subr.mxu0 0.0
        %262 = vmatpush1.msra.mxu0 0.0
        %263 = vmatprep.subr.mxu0 0.0
        %264 = vmatpush1.msra.mxu0 0.0
        %265 = vmatprep.subr.mxu0 0.0
        %266 = vmatpush1.msra.mxu0 0.0
        %267 = vmatprep.subr.mxu0 0.0
        %268 = vmatpush1.msra.mxu0 0.0
        %269 = vmatprep.subr.mxu0 0.0
        %270 = vmatpush1.msra.mxu0 0.0
        %271 = vmatprep.subr.mxu0 0.0
        %272 = vmatpush1.msra.mxu0 0.0
        %273 = vmatprep.subr.mxu0 0.0
        %274 = vmatpush1.msra.mxu0 0.0
        %275 = vmatprep.subr.mxu0 0.0
        %276 = vmatpush1.msra.mxu0 0.0
        %277 = vmatprep.subr.mxu0 0.0
        %278 = vmatpush1.msra.mxu0 0.0
        %279 = vmatprep.subr.mxu0 0.0
        %280 = vmatpush1.msra.mxu0 0.0
        %281 = vmatprep.subr.mxu0 0.0
        %282 = vmatpush1.msra.mxu0 0.0
        %283 = vmatprep.subr.mxu0 0.0
        %284 = vmatpush1.msra.mxu0 0.0
        %285 = vmatprep.subr.mxu0 0.0
        %286 = vmatpush1.msra.mxu0 0.0
        %287 = vmatprep.subr.mxu0 0.0
        %288 = vmatpush1.msra.mxu0 0.0
        %289 = vmatprep.subr.mxu0 0.0
        %290 = vmatpush1.msra.mxu0 0.0
        %291 = vmatprep.subr.mxu0 0.0
        %292 = vmatpush1.msra.mxu0 0.0
        %293 = vmatprep.subr.mxu0 0.0
        %294 = vmatpush1.msra.mxu0 0.0
        %295 = vmatprep.subr.mxu0 0.0
        %296 = vmatpush1.msra.mxu0 0.0
        %297 = vmatprep.subr.mxu0 0.0
        %298 = vmatpush1.msra.mxu0 0.0
        %299 = vmatprep.subr.mxu0 0.0
        %300 = vmatpush1.msra.mxu0 0.0
        %301 = vmatprep.subr.mxu0 0.0
        %302 = vmatpush1.msra.mxu0 0.0
        %303 = vmatprep.subr.mxu0 0.0
        %304 = vmatpush1.msra.mxu0 0.0
        %305 = vmatprep.subr.mxu0 0.0
        %306 = vmatpush1.msra.mxu0 0.0
        %307 = vmatprep.subr.mxu0 0.0
        %308 = vmatpush1.msra.mxu0 0.0
        %309 = vmatprep.mubr.f32.mxu0 0.0
        %310 = vmatmul.mubr.f32.gmra.mrb[0].mxu0 %v243
        %v311 = vpop.f32.mrb[0].mxu0
        %v312 = vadd.f32 %v239, %v311
        %v313 = vpop.f32.mrb[0].mxu0
        %314 = vdwg.mxu0
        %s315 = sld [smem:[#allocation2]]
        %v316 = vmul.f32 %v312, %v312
        %317 = vadd.xlane.f32.xlu0 %v316
        %v318 = vpop.xlane.xlu0 %317
        %v319 = vstv %s315
        %v320 = vadd.f32 %v318, %v319
        %v321 = vmax.f32 %v320, 1e-08
        %v322 = vrsqrt.pop %v321
        %v323 = vmul.f32 %v321, %v322
        %vm324 = vcmp.eq.f32.partialorder %v321, inf
        %v325 = vsel %vm324, %v321, %v323
        %vm326 = vcmp.eq.f32.partialorder %v321, 0.0
        %v327 = vand.u32 %v321, 2147483648
        %v328 = vsel %vm326, %v327, %v325
        %329 = vrot.lane.b32.xlu0 %v312, 1
        %v330 = vpop.permute.xlu0 %329
        %v331 = vlaneseq
        %v332 = vand.u32 %v331, 127
        %vm333 = vcmp.eq.s32.totalorder %v332, 0
        %v334 = vsel %vm333, %v328, %v330
        %335 = vst [vmem:[%s228] sm:$0xff] %v334
        %s336 = sand.u32 %s120, 1
        %s337 = scalar_lea.sflag [#allocation5], %s336
        %s338 = sand.u32 %s120, 1
        %s339 = smul.addr %s338, 8
        %s340 = scalar_lea.vmem [#allocation8], %s339
        // Predicated region
        $region45: #{tpu_custom_call.1} parent=35 // pred_check
          %p341 = pneg %p130
        $region46: #{tpu_custom_call.1} parent=35 // pred_check_branch
          %343 = sbr.rel (%p341) target = $region48
        $region47: #{tpu_custom_call.1} parent=35 // pred_region
          %s345 = ssub.s32 128, 128
          %346 = vsyncadd %s337, %s345
          %s347 = smul.addr %s23, 128
          %s348 = scalar_lea.hbm %s4, %s347
          %s350 = sshll.u32 %s340, 4
          %s351 = int_to_ptr.vmem [resolvable:$true] %s350
          %353 = dma.vmem_to_hbm [thread:$0]  %s351, 128, %s348, %s337
        $region48: #{tpu_custom_call.1} parent=35 // pred_fallthru
          _
      $region36: #{tpu_custom_call.1} parent=5 // pred_fallthru
        _
      %p354 = scmp.le.s32.totalorder 2, %s18
      // Predicated region
      $region49: #{tpu_custom_call.1} parent=5 // pred_check
        %p355 = pneg %p354
      $region50: #{tpu_custom_call.1} parent=5 // pred_check_branch
        %357 = sbr.rel (%p355) target = $region52
      $region51: #{tpu_custom_call.1} parent=5 // pred_region
        %s358 = ssub.s32 %s18, 2
        // Predicated region
        $region53: #{tpu_custom_call.1} parent=51 // pred_check
          %p359 = pneg %p136
        $region54: #{tpu_custom_call.1} parent=51 // pred_check_branch
          %361 = sbr.rel (%p359) target = $region56
        $region55: #{tpu_custom_call.1} parent=51 // pred_region
          %s362 = sand.u32 %s121, 1
          %s363 = scalar_lea.sflag [#allocation5], %s362
          %s364 = sand.u32 %s121, 1
          %s365 = smul.addr %s364, 8
          %s366 = scalar_lea.vmem [#allocation8], %s365
          %367 = dma.done %s363, 128
        $region56: #{tpu_custom_call.1} parent=51 // pred_fallthru
          _
      $region52: #{tpu_custom_call.1} parent=5 // pred_fallthru
        _
    $region6: #{tpu_custom_call.1} parent=1 // loop_footer
      %s22 = sadd.s32 1, %s18
    $region7: #{tpu_custom_call.1} parent=1 // loop_footer_branch
      %17 = sbr.rel target = $region3
    $region8: #{tpu_custom_call.1} parent=1 // loop_exit
      _
    %368 = vsyncpa [#allocation4], 1
    %s369 = scalar_lea.sflag [#allocation4], 1
    %370 = vsyncpa %s369, 1
    %371 = vsyncpa [#allocation7], 1
    %372 = vsyncpa [#allocation5], 1
    %s373 = scalar_lea.sflag [#allocation5], 1
    %374 = vsyncpa %s373, 1

</llo_original>
